<compile_context>
chip_gen: v5e
topology: v5e:2x2
jax: 0.10.0
libtpu: 0.0.40
codegen_flags: <defaults>
</compile_context>

<pallas_src>
import jax
import jax.numpy as jnp
from jax.experimental import pallas as pl
from jax.experimental.pallas import tpu as pltpu


def _relu3_kernel(x_ref, o_ref):
    # Compute in f32 (free: VPU has large slack, kernel is HBM-bound).
    # max(0, x^3/6) == (max(0, x))^3 / 6  (cube is monotone & sign-preserving),
    # which also avoids cubing large-magnitude negatives.
    x = jnp.maximum(x_ref[...].astype(jnp.float32), 0.0)
    o_ref[...] = (x * x * x * (1.0 / 6.0)).astype(o_ref.dtype)


def _round_up(a: int, b: int) -> int:
    return ((a + b - 1) // b) * b


def _relu3_jnp(x_flat: jax.Array, dtype) -> jax.Array:
    # Tiny ragged-tail / fallback path (plain jnp, < 128 elements typically).
    t = jnp.maximum(x_flat.astype(jnp.float32), 0.0)
    return (t * t * t * (1.0 / 6.0)).astype(dtype)


def _relu3_2d(x2d: jax.Array, target_block_bytes: int) -> jax.Array:
    rows, cols = x2d.shape
    dtype = x2d.dtype
    itemsize = jnp.dtype(dtype).itemsize
    # Sublane alignment: 8 for 32-bit, 16 for 16-bit, 32 for 8-bit dtypes.
    sub_align = max(8, 32 // itemsize)

    # Natural step count at ~target_block_bytes per block.
    target_rows = max(sub_align,
                      (target_block_bytes // (cols * itemsize))
                      // sub_align * sub_align)
    grid_len = pl.cdiv(rows, target_rows)

    if grid_len <= 1:
        # Whole array fits one block: no split (best for 1-TC v5e/v6e; loss on
        # v7x is negligible at this size).  Full-dim block needs no masking.
        grid_len = 1
        block_rows = rows
    else:
        # Prefer >= 4-8 even steps while keeping blocks >= ~1 MiB: balances
        # v7x's 2 TensorCores and overlaps read/write DMA streams across steps.
        min_rows = max(sub_align,
                       ((1 << 20) // (cols * itemsize)) // sub_align * sub_align)
        max_steps = max(2, rows // min_rows)
        grid_len = max(grid_len, min(8, max_steps))
        if grid_len % 2:
            grid_len += 1
        block_rows = max(sub_align,
                         _round_up(pl.cdiv(rows, grid_len), sub_align))
        grid_len = pl.cdiv(rows, block_rows)   # partial last block is fine

    cost = pl.CostEstimate(
        flops=4 * rows * cols,
        transcendentals=0,
        bytes_accessed=2 * rows * cols * itemsize,
    )

    return pl.pallas_call(
        _relu3_kernel,
        out_shape=jax.ShapeDtypeStruct((rows, cols), dtype),
        grid_spec=pltpu.PrefetchScalarGridSpec(
            num_scalar_prefetch=0,
            grid=(grid_len,),
            in_specs=[pl.BlockSpec((block_rows, cols), lambda i: (i, 0))],
            out_specs=pl.BlockSpec((block_rows, cols), lambda i: (i, 0)),
        ),
        compiler_params=pltpu.CompilerParams(
            dimension_semantics=("parallel",),
            vmem_limit_bytes=32 * 1024 * 1024,
        ),
        cost_estimate=cost,
    )(x2d)


def relu3(x: jax.Array, *, target_block_bytes: int = 4 * 1024 * 1024) -> jax.Array:
    """Elementwise max(0, x**3 / 6), computed in a Pallas TPU kernel."""
    orig_shape = x.shape
    dtype = x.dtype
    n = x.size
    if n == 0:
        return x

    # Pick a lane-dense column count that divides n exactly -> zero extra
    # copies (no pad, no slice).  Blocks span the full width, so every DMA is
    # one contiguous HBM region regardless of which cols we pick.
    cols = None
    for c in (1024, 512, 256, 128):
        if n % c == 0:
            cols = c
            break

    if cols is not None:
        rows = n // cols
        out2d = _relu3_2d(x.reshape(rows, cols), target_block_bytes)
        return out2d.reshape(orig_shape)

    # Ragged size (n % 128 != 0): kernel on the 128-aligned body, tiny
    # (<128-element) tail in plain jnp.  Cheaper than padding the whole array.
    cols = 128
    body_n = (n // cols) * cols
    x_flat = x.reshape(-1)
    if body_n == 0:
        return _relu3_jnp(x_flat, dtype).reshape(orig_shape)
    body_out = _relu3_2d(x_flat[:body_n].reshape(body_n // cols, cols),
                         target_block_bytes).reshape(-1)
    tail_out = _relu3_jnp(x_flat[body_n:], dtype)
    return jnp.concatenate([body_out, tail_out]).reshape(orig_shape)


if __name__ == "__main__":
    key = jax.random.PRNGKey(0)
    # NCHW input, small shapes: batch=2, channels=4, spatial=16
    x = jax.random.normal(key, (2, 4, 16, 16), dtype=jnp.float32)

    y = relu3(x)
    y = jax.block_until_ready(y)

    # Reference check (pure JAX)
    y_ref = jnp.maximum(0.0, (1.0 / 6.0) * x**3)
    assert y.shape == x.shape and y.dtype == x.dtype
    assert jnp.allclose(y, y_ref, atol=1e-6, rtol=1e-6)

    # Non-multiple-of-128 size + bf16 exercises the ragged-tail and f32-upcast
    # paths.
    x2 = jax.random.normal(jax.random.PRNGKey(1), (3, 5, 17, 13),
                           dtype=jnp.bfloat16)
    y2 = jax.block_until_ready(relu3(x2))
    y2_ref = jnp.maximum(
        0.0, (1.0 / 6.0) * x2.astype(jnp.float32) ** 3).astype(jnp.bfloat16)
    assert y2.shape == x2.shape and y2.dtype == x2.dtype
    assert jnp.allclose(y2.astype(jnp.float32), y2_ref.astype(jnp.float32),
                        atol=1e-2, rtol=1e-2)

    # Larger multi-block size exercises the even >=4-step grid + partial edge
    # block path.
    x3 = jax.random.normal(jax.random.PRNGKey(2), (4, 8, 64, 80),
                           dtype=jnp.float32)
    y3 = jax.block_until_ready(relu3(x3))
    y3_ref = jnp.maximum(0.0, (1.0 / 6.0) * x3**3)
    assert jnp.allclose(y3, y3_ref, atol=1e-6, rtol=1e-6)

    print("KERNEL_OK")
</pallas_src>

<mosaic_0001>
module attributes {stable_mosaic.version = 11 : i64} {
  func.func @_relu3_kernel(%arg0: i32, %arg1: memref<2x1024xf32, #tpu.memory_space<vmem>>, %arg2: memref<2x1024xf32, #tpu.memory_space<vmem>>) attributes {dimension_semantics = [#tpu.dimension_semantics<parallel>], iteration_bounds = array<i64: 1>, scalar_prefetch = 0 : i64, scratch_operands = 0 : i64, tpu.core_type = #tpu.core_type<tc>, window_params = [{transform_indices = @transform_0, window_bounds = array<i64: 2, 1024>}, {transform_indices = @transform_1, window_bounds = array<i64: 2, 1024>}]} {
    %c0 = arith.constant 0 : index
    %c0_0 = arith.constant 0 : index
    %0 = vector.load %arg1[%c0, %c0_0] : memref<2x1024xf32, #tpu.memory_space<vmem>>, vector<2x1024xf32>
    %cst = arith.constant 0.000000e+00 : f32
    %1 = vector.broadcast %cst : f32 to vector<2x1024xf32>
    %2 = arith.maximumf %0, %1 : vector<2x1024xf32>
    %3 = arith.mulf %2, %2 : vector<2x1024xf32>
    %4 = arith.mulf %3, %2 : vector<2x1024xf32>
    %cst_1 = arith.constant 0.166666672 : f32
    %5 = vector.broadcast %cst_1 : f32 to vector<2x1024xf32>
    %6 = arith.mulf %4, %5 : vector<2x1024xf32>
    %c0_2 = arith.constant 0 : index
    %c0_3 = arith.constant 0 : index
    %7 = vector.load %arg2[%c0_2, %c0_3] : memref<2x1024xf32, #tpu.memory_space<vmem>>, vector<2x1024xf32>
    tpu.vector_store %arg2[%c0_2, %c0_3], %6 {strides = array<i32>} : memref<2x1024xf32, #tpu.memory_space<vmem>>, vector<2x1024xf32>,
    return
  }
  func.func @transform_0(%arg0: i32) -> (i32, i32) {
    %c0_i32 = arith.constant 0 : i32
    %c0_i32_0 = arith.constant 0 : i32
    return %arg0, %c0_i32 : i32, i32
  }
  func.func @transform_1(%arg0: i32) -> (i32, i32) {
    %c0_i32 = arith.constant 0 : i32
    %c0_i32_0 = arith.constant 0 : i32
    return %arg0, %c0_i32 : i32, i32
  }
}

</mosaic_0001>

<llo_original>
// kernel: tpu_custom_call.1
$region0: #{tpu_custom_call.1}
  #allocation0 [shape = 'u32[]', space=smem, size = 0x4, offset = 0x4, fixed_abs, tag = 'smem constant byte address 0x4 - core index']
  #allocation1 [shape = 'u32[72,128]{1,0:T(1,128)}', space=vmem, size = 0x9000, scoped, tag = 'internal scratch']
  %s0 = inlined_call_operand.hbm [shape: f32[2,1024], index: 0, kind: input, shape index: {}]
  %s1 = inlined_call_operand.hbm [shape: f32[2,1024], index: 1, kind: output, shape index: {}]
  %s2 = sld [smem:[#allocation0]]
  $region18: #{tpu_custom_call.1} parent=0
    _
  %s4 = ssub.s32 1, %s2
  %s5 = scalar_select 0, %s4, %s2
  $region1: #{tpu_custom_call.1} parent=0
    #allocation2 [shape = 'u8[8192]{0}', space=vmem, size = 0x2000, scoped, tag = 'input window, operand 0, single buffered']
    #allocation3 [shape = 's32[1]{0}', space=sflag, size = 0x4, scoped, tag = 'scoped memory for tpu_custom_call.1']
    #allocation4 [shape = 's32[1]{0}', space=sflag, size = 0x4, scoped, tag = 'scoped memory for tpu_custom_call.1']
    #allocation5 [shape = 'u8[8192]{0}', space=vmem, size = 0x2000, scoped, tag = 'output window, operand 0, single buffered']
    %6 = vsyncpa [#allocation3], 0
    %7 = vsyncpa [#allocation4], 0
    // Predicated region
    $region2: #{tpu_custom_call.1} parent=1 // pred_check
      _
    $region3: #{tpu_custom_call.1} parent=1 // pred_check_branch
      %9 = sbr.rel (0) target = $region5
    $region4: #{tpu_custom_call.1} parent=1 // pred_region
      %11 = vsyncadd [#allocation3], 0
      %s13 = sshll.u32 %s0, 4
      %s14 = int_to_ptr.hbm [resolvable:$true] %s13
      %s15 = sshll.u32 [#allocation2], 4
      %s16 = int_to_ptr.vmem [resolvable:$true] %s15
      %18 = dma.hbm_to_vmem [thread:$0]  %s14, 256, %s16, [#allocation3]
    $region5: #{tpu_custom_call.1} parent=1 // pred_fallthru
      _
    // Predicated region
    $region6: #{tpu_custom_call.1} parent=1 // pred_check
      _
    $region7: #{tpu_custom_call.1} parent=1 // pred_check_branch
      %20 = sbr.rel (0) target = $region9
    $region8: #{tpu_custom_call.1} parent=1 // pred_region
      %22 = dma.done [#allocation3], 256
    $region9: #{tpu_custom_call.1} parent=1 // pred_fallthru
      _
    %v23 = vld [vmem:[#allocation2] sm:$0xff]
    %v24 = vld [vmem:[#allocation2 + $0x8] sm:$0xff]
    %v25 = vmax.f32 %v23, 0.0
    %v26 = vmax.f32 %v24, 0.0
    %v27 = vmul.f32 %v25, %v25
    %v28 = vmul.f32 %v26, %v26
    %v29 = vmul.f32 %v27, %v25
    %v30 = vmul.f32 %v28, %v26
    %v31 = vmul.f32 %v29, 0.16666667
    %v32 = vmul.f32 %v30, 0.16666667
    %33 = vst [vmem:[#allocation5] sm:$0xff] %v31
    %34 = vst [vmem:[#allocation5 + $0x8] sm:$0xff] %v32
    // Predicated region
    $region10: #{tpu_custom_call.1} parent=1 // pred_check
      _
    $region11: #{tpu_custom_call.1} parent=1 // pred_check_branch
      %36 = sbr.rel (0) target = $region13
    $region12: #{tpu_custom_call.1} parent=1 // pred_region
      %38 = vsyncadd [#allocation4], 0
      %s40 = sshll.u32 [#allocation5], 4
      %s41 = int_to_ptr.vmem [resolvable:$true] %s40
      %s42 = sshll.u32 %s1, 4
      %s43 = int_to_ptr.hbm [resolvable:$true] %s42
      %45 = dma.vmem_to_hbm [thread:$0]  %s41, 256, %s43, [#allocation4]
    $region13: #{tpu_custom_call.1} parent=1 // pred_fallthru
      _
    // Predicated region
    $region14: #{tpu_custom_call.1} parent=1 // pred_check
      _
    $region15: #{tpu_custom_call.1} parent=1 // pred_check_branch
      %47 = sbr.rel (0) target = $region17
    $region16: #{tpu_custom_call.1} parent=1 // pred_region
      %49 = dma.done [#allocation4], 256
    $region17: #{tpu_custom_call.1} parent=1 // pred_fallthru
      _
    %50 = vsyncpa [#allocation3], 1
    %51 = vsyncpa [#allocation4], 1

</llo_original>
